<compile_context>
chip_gen: v5e
topology: v5e:2x2
jax: 0.10.0
libtpu: 0.0.40
codegen_flags: <defaults>
</compile_context>

<pallas_src>
import jax
import jax.numpy as jnp
from jax import lax
from jax.experimental import pallas as pl
from jax.experimental.pallas import tpu as pltpu


def gat_kernel(x_ref, adj_ref, wqkv_ref, bqkv_ref, wo_ref, bo_ref, out_ref):
    """One batch tile (TB batch elements) per grid step.

    x_ref    : [TB, N, Cin]  node encodings
    adj_ref  : [TB, N, N]    int8 adjacency (1 = edge allowed, 0 = masked)
    wqkv_ref : [Cin, 3E]     fused (Linear + MHA in_proj) weights; the query
                             columns are pre-scaled by 1/sqrt(E)
    bqkv_ref : [1, 3E]       fused biases
    wo_ref   : [E, E]        MHA out_proj weight (pre-transposed to [in, out])
    bo_ref   : [1, E]        MHA out_proj bias
    out_ref  : [TB, N, E]
    """
    f32 = jnp.float32
    tb, n, e = out_ref.shape
    cin = x_ref.shape[-1]

    # Fused QKV projection over all TB*N rows: a single wide MXU pass.
    x2 = x_ref[...].reshape(tb * n, cin)                        # [TB*N, Cin]
    qkv = jnp.dot(x2, wqkv_ref[...], preferred_element_type=f32) + bqkv_ref[...]
    q = qkv[:, :e].reshape(tb, n, e)          # already carries 1/sqrt(E)
    k = qkv[:, e:2 * e].reshape(tb, n, e)
    v = qkv[:, 2 * e:3 * e].reshape(tb, n, e)

    # scores[b, i, j] = (q_bi * scale) . k_bj ; mask with a large finite
    # negative so fully-masked rows degrade gracefully (no inf - inf NaN).
    scores = jnp.einsum("bqe,bke->bqk", q, k, preferred_element_type=f32)
    scores = jnp.where(adj_ref[...].astype(f32) > 0.0, scores, f32(-1e30))

    m = jnp.max(scores, axis=-1, keepdims=True)
    p = jnp.exp(scores - m)
    denom = jnp.sum(p, axis=-1, keepdims=True)
    attn = p * pl.reciprocal(denom, approx=False)               # softmax

    ctx = jnp.einsum("bqk,bke->bqe", attn, v, preferred_element_type=f32)

    # MultiheadAttention out_proj on the row-flattened slab.
    ctx2 = ctx.reshape(tb * n, e)
    out = jnp.dot(ctx2, wo_ref[...], preferred_element_type=f32) + bo_ref[...]
    out_ref[...] = out.reshape(tb, n, e).astype(out_ref.dtype)


def _pick_batch_tile(B, N, Cin, E, vmem_budget=8 << 20):
    """Largest divisor of B whose per-step footprint fits the budget, while
    keeping >= 2 grid steps so the 'parallel' axis can span v7x's 2 cores."""
    per_b = (2 * 4 * N * Cin        # x block (double-buffered)
             + 2 * N * N            # adj int8 block (double-buffered)
             + 2 * 4 * N * E        # out block (double-buffered)
             + 4 * N * 3 * E        # qkv slab
             + 3 * 4 * N * N        # scores / exp / attn
             + 2 * 4 * N * E)       # ctx / out slab
    cap = max(1, min(B, vmem_budget // max(per_b, 1)))
    if B >= 2:
        cap = min(cap, B // 2)
    tb = max(1, cap)
    while B % tb:
        tb -= 1
    return tb


def gat_forward(x, adj, params):
    """x: [B, N, Cin] f32, adj: [B, N, N] bool, params: dict of torch-layout weights."""
    B, N, Cin = x.shape
    E = params["wq"].shape[0]
    hi = lax.Precision.HIGHEST

    # --- offline weight fusion (tiny matrices; glue, not hot path) ------------
    # torch: y = (x @ w1.T + b1) @ w2.T + b2  ==  x @ Wf + bf
    def fuse(w1, b1, w2, b2, scale=1.0):
        w1, b1 = jnp.asarray(w1, jnp.float32), jnp.asarray(b1, jnp.float32)
        w2, b2 = jnp.asarray(w2, jnp.float32), jnp.asarray(b2, jnp.float32)
        wf = jnp.matmul(w1.T, w2.T, precision=hi) * scale                  # [Cin, E]
        bf = (jnp.matmul(b1[None, :], w2.T, precision=hi) + b2[None, :]) * scale
        return wf, bf                                                      # [1, E]

    scale = float(E) ** -0.5   # MHA 1/sqrt(head_dim), folded into the q stream
    wq_f, bq_f = fuse(params["wq"], params["bq"], params["wiq"], params["biq"], scale)
    wk_f, bk_f = fuse(params["wk"], params["bk"], params["wik"], params["bik"])
    wv_f, bv_f = fuse(params["wv"], params["bv"], params["wiv"], params["biv"])

    w_qkv = jnp.concatenate([wq_f, wk_f, wv_f], axis=1)   # [Cin, 3E]
    b_qkv = jnp.concatenate([bq_f, bk_f, bv_f], axis=1)   # [1, 3E]
    wo_t = jnp.asarray(params["wo"], jnp.float32).T        # [E, E]
    bo = jnp.asarray(params["bo"], jnp.float32).reshape(1, -1)

    adj_i8 = adj.astype(jnp.int8)                          # 4x less DMA than f32

    # Pad the node axis to a sublane multiple so in-kernel reshapes are free.
    Np = N
    if N % 8:
        pad = 8 - N % 8
        Np = N + pad
        x = jnp.pad(x, ((0, 0), (0, pad), (0, 0)))
        adj_i8 = jnp.pad(adj_i8, ((0, 0), (0, pad), (0, pad)))

    TB = _pick_batch_tile(B, Np, Cin, E)
    w_args = (w_qkv, b_qkv, wo_t, bo)

    def full_spec(a):
        nd = a.ndim
        return pl.BlockSpec(a.shape, lambda b, _nd=nd: (0,) * _nd)

    in_specs = [
        pl.BlockSpec((TB, Np, Cin), lambda b: (b, 0, 0)),
        pl.BlockSpec((TB, Np, Np), lambda b: (b, 0, 0)),
    ] + [full_spec(a) for a in w_args]

    out = pl.pallas_call(
        gat_kernel,
        out_shape=jax.ShapeDtypeStruct((B, Np, E), jnp.float32),
        grid_spec=pltpu.PrefetchScalarGridSpec(
            num_scalar_prefetch=0,
            grid=(B // TB,),
            in_specs=in_specs,
            out_specs=pl.BlockSpec((TB, Np, E), lambda b: (b, 0, 0)),
        ),
        compiler_params=pltpu.CompilerParams(
            dimension_semantics=("parallel",)),
    )(x, adj_i8, *w_args)
    return out[:, :N, :] if Np != N else out


def gat_reference(x, adj, p):
    """Pure-JAX reference matching torch GAT.forward semantics exactly."""
    f32 = jnp.float32
    q0 = x @ p["wq"].T + p["bq"]
    k0 = x @ p["wk"].T + p["bk"]
    v0 = x @ p["wv"].T + p["bv"]
    q = q0 @ p["wiq"].T + p["biq"]
    k = k0 @ p["wik"].T + p["bik"]
    v = v0 @ p["wiv"].T + p["biv"]
    E = q.shape[-1]
    scale = 1.0 / jnp.sqrt(jnp.asarray(E, f32))
    scores = jnp.einsum("bqe,bke->bqk", q * scale, k)
    scores = jnp.where(adj, scores, -jnp.inf)
    attn = jax.nn.softmax(scores, axis=-1)
    ctx = jnp.einsum("bqk,bke->bqe", attn, v)
    return ctx @ p["wo"].T + p["bo"]


def make_params(key, in_channels, out_channels):
    ks = jax.random.split(key, 16)
    s_in = 1.0 / jnp.sqrt(jnp.float32(in_channels))
    s_out = 1.0 / jnp.sqrt(jnp.float32(out_channels))
    E, C = out_channels, in_channels
    p = {
        "wq": jax.random.uniform(ks[0], (E, C), jnp.float32, -s_in, s_in),
        "bq": jax.random.uniform(ks[1], (E,), jnp.float32, -s_in, s_in),
        "wk": jax.random.uniform(ks[2], (E, C), jnp.float32, -s_in, s_in),
        "bk": jax.random.uniform(ks[3], (E,), jnp.float32, -s_in, s_in),
        "wv": jax.random.uniform(ks[4], (E, C), jnp.float32, -s_in, s_in),
        "bv": jax.random.uniform(ks[5], (E,), jnp.float32, -s_in, s_in),
        # MultiheadAttention in_proj (split into q/k/v chunks) + out_proj
        "wiq": jax.random.uniform(ks[6], (E, E), jnp.float32, -s_out, s_out),
        "biq": jax.random.uniform(ks[7], (E,), jnp.float32, -s_out, s_out),
        "wik": jax.random.uniform(ks[8], (E, E), jnp.float32, -s_out, s_out),
        "bik": jax.random.uniform(ks[9], (E,), jnp.float32, -s_out, s_out),
        "wiv": jax.random.uniform(ks[10], (E, E), jnp.float32, -s_out, s_out),
        "biv": jax.random.uniform(ks[11], (E,), jnp.float32, -s_out, s_out),
        "wo": jax.random.uniform(ks[12], (E, E), jnp.float32, -s_out, s_out),
        "bo": jax.random.uniform(ks[13], (E,), jnp.float32, -s_out, s_out),
    }
    return p


if __name__ == "__main__":
    key = jax.random.PRNGKey(0)
    k_x, k_adj, k_p = jax.random.split(key, 3)

    # B=4 so the batch-tiled path (TB=2, grid=(2,)) is exercised on-device.
    B, N, C_IN, C_OUT = 4, 8, 32, 32
    x = jax.random.normal(k_x, (B, N, C_IN), jnp.float32)
    # Random adjacency with self-loops so no query row is fully masked
    # (a fully masked row yields NaN in torch as well; the kernel itself
    # degrades to a uniform softmax thanks to the finite -1e30 sentinel).
    adj = jax.random.uniform(k_adj, (B, N, N)) > 0.5
    adj = adj | jnp.eye(N, dtype=bool)[None]

    params = make_params(k_p, C_IN, C_OUT)

    out = gat_forward(x, adj, params)
    out = jax.block_until_ready(out)

    ref = gat_reference(x, adj, params)
    assert out.shape == (B, N, C_OUT)
    assert jnp.allclose(out, ref, atol=2e-4, rtol=2e-4), (
        float(jnp.max(jnp.abs(out - ref))))

    print("KERNEL_OK")
</pallas_src>

<mosaic_0001>
module attributes {stable_mosaic.version = 11 : i64} {
  func.func @gat_kernel(%arg0: i32, %arg1: memref<2x8x32xf32, #tpu.memory_space<vmem>>, %arg2: memref<2x8x8xi8, #tpu.memory_space<vmem>>, %arg3: memref<32x96xf32, #tpu.memory_space<vmem>>, %arg4: memref<1x96xf32, #tpu.memory_space<vmem>>, %arg5: memref<32x32xf32, #tpu.memory_space<vmem>>, %arg6: memref<1x32xf32, #tpu.memory_space<vmem>>, %arg7: memref<2x8x32xf32, #tpu.memory_space<vmem>>) attributes {dimension_semantics = [#tpu.dimension_semantics<parallel>], iteration_bounds = array<i64: 2>, scalar_prefetch = 0 : i64, scratch_operands = 0 : i64, tpu.core_type = #tpu.core_type<tc>, window_params = [{transform_indices = @transform_0, window_bounds = array<i64: 2, 8, 32>}, {transform_indices = @transform_1, window_bounds = array<i64: 2, 8, 8>}, {pipeline_mode = #tpu.pipeline_mode<synchronous>, transform_indices = @transform_2, window_bounds = array<i64: 32, 96>}, {pipeline_mode = #tpu.pipeline_mode<synchronous>, transform_indices = @transform_3, window_bounds = array<i64: 1, 96>}, {pipeline_mode = #tpu.pipeline_mode<synchronous>, transform_indices = @transform_4, window_bounds = array<i64: 32, 32>}, {pipeline_mode = #tpu.pipeline_mode<synchronous>, transform_indices = @transform_5, window_bounds = array<i64: 1, 32>}, {transform_indices = @transform_6, window_bounds = array<i64: 2, 8, 32>}]} {
    %c0 = arith.constant 0 : index
    %c0_0 = arith.constant 0 : index
    %c0_1 = arith.constant 0 : index
    %0 = vector.load %arg1[%c0, %c0_0, %c0_1] : memref<2x8x32xf32, #tpu.memory_space<vmem>>, vector<2x8x32xf32>
    %1 = vector.shape_cast %0 : vector<2x8x32xf32> to vector<16x32xf32>
    %c0_2 = arith.constant 0 : index
    %c0_3 = arith.constant 0 : index
    %2 = vector.load %arg3[%c0_2, %c0_3] : memref<32x96xf32, #tpu.memory_space<vmem>>, vector<32x96xf32>
    %cst = arith.constant dense<0.000000e+00> : vector<16x96xf32>
    %3 = tpu.matmul %1, %2, %cst {dimension_numbers = #tpu.dot_dimension_numbers<[1], [0], [0], [1], [0, 0, 1, 1], [], []>} : vector<16x32xf32>, vector<32x96xf32>, vector<16x96xf32> -> vector<16x96xf32>
    %c0_4 = arith.constant 0 : index
    %c0_5 = arith.constant 0 : index
    %4 = vector.load %arg4[%c0_4, %c0_5] : memref<1x96xf32, #tpu.memory_space<vmem>>, vector<1x96xf32>
    %5 = vector.broadcast %4 : vector<1x96xf32> to vector<16x96xf32>
    %6 = arith.addf %3, %5 : vector<16x96xf32>
    %7 = vector.extract_strided_slice %6 {offsets = [0, 0], sizes = [16, 32], strides = [1, 1]} : vector<16x96xf32> to vector<16x32xf32>
    %8 = vector.shape_cast %7 : vector<16x32xf32> to vector<2x8x32xf32>
    %9 = vector.extract_strided_slice %6 {offsets = [0, 32], sizes = [16, 32], strides = [1, 1]} : vector<16x96xf32> to vector<16x32xf32>
    %10 = vector.shape_cast %9 : vector<16x32xf32> to vector<2x8x32xf32>
    %11 = vector.extract_strided_slice %6 {offsets = [0, 64], sizes = [16, 32], strides = [1, 1]} : vector<16x96xf32> to vector<16x32xf32>
    %12 = vector.shape_cast %11 : vector<16x32xf32> to vector<2x8x32xf32>
    "tpu.trace_start"() <{level = 10 : i32, message = "bqe,bke->bqk"}> : () -> ()
    %cst_6 = arith.constant dense<0.000000e+00> : vector<2x8x8xf32>
    %13 = tpu.matmul %8, %10, %cst_6 {dimension_numbers = #tpu.dot_dimension_numbers<[2], [2], [1], [1], [0, 0, 0, 1, 1, 1], [0], [0]>} : vector<2x8x32xf32>, vector<2x8x32xf32>, vector<2x8x8xf32> -> vector<2x8x8xf32>
    "tpu.trace_stop"() : () -> ()
    %c0_7 = arith.constant 0 : index
    %c0_8 = arith.constant 0 : index
    %c0_9 = arith.constant 0 : index
    %14 = vector.load %arg2[%c0_7, %c0_8, %c0_9] : memref<2x8x8xi8, #tpu.memory_space<vmem>>, vector<2x8x8xi8>
    %15 = arith.sitofp %14 : vector<2x8x8xi8> to vector<2x8x8xf32>
    %cst_10 = arith.constant 0.000000e+00 : f32
    %16 = vector.broadcast %cst_10 : f32 to vector<2x8x8xf32>
    %17 = arith.cmpf ogt, %15, %16 : vector<2x8x8xf32>
    %cst_11 = arith.constant -1.000000e+30 : f32
    %18 = vector.broadcast %cst_11 : f32 to vector<2x8x8xf32>
    %19 = arith.select %17, %13, %18 : vector<2x8x8xi1>, vector<2x8x8xf32>
    %cst_12 = arith.constant dense<0xFF800000> : vector<2x8xf32>
    %20 = vector.multi_reduction <maximumf>, %19, %cst_12 [2] : vector<2x8x8xf32> to vector<2x8xf32>
    %21 = vector.shape_cast %20 : vector<2x8xf32> to vector<2x8x1xf32>
    %22 = vector.broadcast %21 : vector<2x8x1xf32> to vector<2x8x8xf32>
    %23 = arith.subf %19, %22 : vector<2x8x8xf32>
    %24 = math.exp %23 : vector<2x8x8xf32>
    %cst_13 = arith.constant dense<0.000000e+00> : vector<2x8xf32>
    %25 = vector.multi_reduction <add>, %24, %cst_13 [2] : vector<2x8x8xf32> to vector<2x8xf32>
    %26 = vector.shape_cast %25 : vector<2x8xf32> to vector<2x8x1xf32>
    %27 = tpu.reciprocal %26 : vector<2x8x1xf32> -> vector<2x8x1xf32>
    %28 = vector.broadcast %27 : vector<2x8x1xf32> to vector<2x8x8xf32>
    %29 = arith.mulf %24, %28 : vector<2x8x8xf32>
    "tpu.trace_start"() <{level = 10 : i32, message = "bqk,bke->bqe"}> : () -> ()
    %cst_14 = arith.constant dense<0.000000e+00> : vector<2x8x32xf32>
    %30 = tpu.matmul %29, %12, %cst_14 {dimension_numbers = #tpu.dot_dimension_numbers<[2], [1], [1], [2], [0, 0, 0, 1, 1, 2], [0], [0]>} : vector<2x8x8xf32>, vector<2x8x32xf32>, vector<2x8x32xf32> -> vector<2x8x32xf32>
    "tpu.trace_stop"() : () -> ()
    %31 = vector.shape_cast %30 : vector<2x8x32xf32> to vector<16x32xf32>
    %c0_15 = arith.constant 0 : index
    %c0_16 = arith.constant 0 : index
    %32 = vector.load %arg5[%c0_15, %c0_16] : memref<32x32xf32, #tpu.memory_space<vmem>>, vector<32x32xf32>
    %cst_17 = arith.constant dense<0.000000e+00> : vector<16x32xf32>
    %33 = tpu.matmul %31, %32, %cst_17 {dimension_numbers = #tpu.dot_dimension_numbers<[1], [0], [0], [1], [0, 0, 1, 1], [], []>} : vector<16x32xf32>, vector<32x32xf32>, vector<16x32xf32> -> vector<16x32xf32>
    %c0_18 = arith.constant 0 : index
    %c0_19 = arith.constant 0 : index
    %34 = vector.load %arg6[%c0_18, %c0_19] : memref<1x32xf32, #tpu.memory_space<vmem>>, vector<1x32xf32>
    %35 = vector.broadcast %34 : vector<1x32xf32> to vector<16x32xf32>
    %36 = arith.addf %33, %35 : vector<16x32xf32>
    %37 = vector.shape_cast %36 : vector<16x32xf32> to vector<2x8x32xf32>
    %c0_20 = arith.constant 0 : index
    %c0_21 = arith.constant 0 : index
    %c0_22 = arith.constant 0 : index
    %38 = vector.load %arg7[%c0_20, %c0_21, %c0_22] : memref<2x8x32xf32, #tpu.memory_space<vmem>>, vector<2x8x32xf32>
    tpu.vector_store %arg7[%c0_20, %c0_21, %c0_22], %37 {strides = array<i32>} : memref<2x8x32xf32, #tpu.memory_space<vmem>>, vector<2x8x32xf32>,
    return
  }
  func.func @transform_0(%arg0: i32) -> (i32, i32, i32) {
    %c0_i32 = arith.constant 0 : i32
    %c0_i32_0 = arith.constant 0 : i32
    %c0_i32_1 = arith.constant 0 : i32
    return %arg0, %c0_i32, %c0_i32_0 : i32, i32, i32
  }
  func.func @transform_1(%arg0: i32) -> (i32, i32, i32) {
    %c0_i32 = arith.constant 0 : i32
    %c0_i32_0 = arith.constant 0 : i32
    %c0_i32_1 = arith.constant 0 : i32
    return %arg0, %c0_i32, %c0_i32_0 : i32, i32, i32
  }
  func.func @transform_2(%arg0: i32) -> (i32, i32) {
    %c0_i32 = arith.constant 0 : i32
    %c0_i32_0 = arith.constant 0 : i32
    %c0_i32_1 = arith.constant 0 : i32
    return %c0_i32, %c0_i32_0 : i32, i32
  }
  func.func @transform_3(%arg0: i32) -> (i32, i32) {
    %c0_i32 = arith.constant 0 : i32
    %c0_i32_0 = arith.constant 0 : i32
    %c0_i32_1 = arith.constant 0 : i32
    return %c0_i32, %c0_i32_0 : i32, i32
  }
  func.func @transform_4(%arg0: i32) -> (i32, i32) {
    %c0_i32 = arith.constant 0 : i32
    %c0_i32_0 = arith.constant 0 : i32
    %c0_i32_1 = arith.constant 0 : i32
    return %c0_i32, %c0_i32_0 : i32, i32
  }
  func.func @transform_5(%arg0: i32) -> (i32, i32) {
    %c0_i32 = arith.constant 0 : i32
    %c0_i32_0 = arith.constant 0 : i32
    %c0_i32_1 = arith.constant 0 : i32
    return %c0_i32, %c0_i32_0 : i32, i32
  }
  func.func @transform_6(%arg0: i32) -> (i32, i32, i32) {
    %c0_i32 = arith.constant 0 : i32
    %c0_i32_0 = arith.constant 0 : i32
    %c0_i32_1 = arith.constant 0 : i32
    return %arg0, %c0_i32, %c0_i32_0 : i32, i32, i32
  }
}

</mosaic_0001>

<llo_original>
// kernel: tpu_custom_call.1
$region0: #{tpu_custom_call.1}
  #allocation0 [shape = 'u32[]', space=smem, size = 0x4, offset = 0x4, fixed_abs, tag = 'smem constant byte address 0x4 - core index']
  #allocation1 [shape = 'u32[72,128]{1,0:T(1,128)}', space=vmem, size = 0x9000, scoped, tag = 'internal scratch']
  %s0 = inlined_call_operand.hbm [shape: f32[4,8,32], index: 0, kind: input, shape index: {}]
  %s1 = inlined_call_operand.hbm [shape: s8[4,8,8], index: 1, kind: input, shape index: {}]
  %s2 = inlined_call_operand.hbm [shape: f32[32,96], index: 2, kind: input, shape index: {}]
  %s3 = inlined_call_operand.vmem [shape: f32[1,96], index: 3, kind: input, shape index: {}]
  %s4 = inlined_call_operand.hbm [shape: f32[32,32], index: 4, kind: input, shape index: {}]
  %s5 = inlined_call_operand.vmem [shape: f32[1,32], index: 5, kind: input, shape index: {}]
  %s6 = inlined_call_operand.hbm [shape: f32[4,8,32], index: 6, kind: output, shape index: {}]
  %s7 = sld [smem:[#allocation0]]
  $region73: #{tpu_custom_call.1} parent=0
    _
  %s9 = ssub.s32 1, %s7
  %s10 = scalar_select 0, %s9, %s7
  $region1: #{tpu_custom_call.1} parent=0
    #allocation2 [shape = 'u8[16384]{0}', space=vmem, size = 0x4000, scoped, tag = 'input window, operand 0']
    #allocation3 [shape = 's32[2]{0}', space=sflag, size = 0x8, scoped, tag = 'scoped memory for tpu_custom_call.1']
    #allocation4 [shape = 's32[2]{0}', space=sflag, size = 0x8, scoped, tag = 'scoped memory for tpu_custom_call.1']
    #allocation5 [shape = 'u8[4096]{0}', space=vmem, size = 0x1000, scoped, tag = 'input window, operand 1']
    #allocation6 [shape = 's32[2]{0}', space=sflag, size = 0x8, scoped, tag = 'scoped memory for tpu_custom_call.1']
    #allocation7 [shape = 'u8[16384]{0}', space=vmem, size = 0x4000, scoped, tag = 'input window, operand 2, single buffered']
    #allocation8 [shape = 'u8[16384]{0}', space=vmem, size = 0x4000, scoped, tag = 'input window, operand 4, single buffered']
    #allocation9 [shape = 's32[1]{0}', space=sflag, size = 0x4, scoped, tag = 'scoped memory for tpu_custom_call.1']
    #allocation10 [shape = 'u8[16384]{0}', space=vmem, size = 0x4000, scoped, tag = 'output window, operand 0']
    %11 = vsyncpa [#allocation3], 0
    %s12 = scalar_lea.sflag [#allocation3], 1
    %13 = vsyncpa %s12, 0
    %14 = vsyncpa [#allocation6], 0
    %s15 = scalar_lea.sflag [#allocation6], 1
    %16 = vsyncpa %s15, 0
    %17 = vsyncpa [#allocation9], 0
    %18 = vsyncpa [#allocation4], 0
    %s19 = scalar_lea.sflag [#allocation4], 1
    %20 = vsyncpa %s19, 0
    loop: start=0, step=1, limit=4
    $region2: #{tpu_custom_call.1} parent=1 // loop_pre_header
      _
    $region3: #{tpu_custom_call.1} parent=1 // loop_header
      %s22 = sphi 0, %s26
      %p23 = scmp.ge.s32.totalorder %s22, 4
      %s32 = sphi 0, %s34
      %s35 = sphi 0, %s32
      %s36 = sphi 0, %s35
      %s52 = sphi 0, %s36
      %s58 = sphi 0, %s60
      %s61 = sphi 0, %s58
      %s62 = sphi 0, %s61
      %s78 = sphi 0, %s62
      %s82 = sphi 0, %s82
      %s84 = sphi 0, %s82
      %s85 = sphi 0, %s84
      %s99 = sphi 0, %s85
      %s103 = sphi 0, %s103
      %s105 = sphi 0, %s103
      %s106 = sphi 0, %s105
      %s120 = sphi 0, %s106
      %s124 = sphi 0, %s124
      %s126 = sphi 0, %s124
      %s127 = sphi 0, %s126
      %s141 = sphi 0, %s127
      %s145 = sphi 0, %s145
      %s147 = sphi 0, %s145
      %s148 = sphi 0, %s147
      %s162 = sphi 0, %s148
      %s168 = sphi 0, %s170
      %s171 = sphi 0, %s168
      %s172 = sphi 0, %s171
      %s188 = sphi 0, %s172
    $region4: #{tpu_custom_call.1} parent=1 // loop_header_branch
      %25 = sbr.rel (%p23) target = $region8
    $region5: #{tpu_custom_call.1} parent=1 // loop_body
      %s27 = ssub.s32 %s22, 1
      %s28 = ssub.s32 %s22, 2
      %s29 = sadd.s32 %s22, 1
      %s30 = ssub.s32 %s22, %s29
      %p31 = scmp.eq.s32.totalorder %s30, 0
      %s33 = sadd.s32 %s32, 1
      %s34 = scalar_select %p31, %s32, %s33
      %p37 = pneg %p31
      %p38 = scmp.eq.s32.totalorder %s22, 1
      %p39 = por %p37, %p38
      %p40 = scmp.ne.s32.totalorder %s32, %s35
      %p41 = scmp.eq.s32.totalorder %s22, 0
      %p42 = por %p40, %p41
      %p43 = scmp.ne.s32.totalorder %s32, %s35
      %p44 = scmp.eq.s32.totalorder %s27, 1
      %p45 = por %p43, %p44
      %p46 = scmp.ne.s32.totalorder %s35, %s36
      %p47 = scmp.eq.s32.totalorder %s27, 0
      %p48 = por %p46, %p47
      %p49 = scmp.ne.s32.totalorder %s35, %s36
      %p50 = scmp.eq.s32.totalorder %s28, 1
      %p51 = por %p49, %p50
      %p53 = scmp.ne.s32.totalorder %s36, %s52
      %p54 = scmp.eq.s32.totalorder %s28, 0
      %p55 = por %p53, %p54
      %s56 = ssub.s32 %s22, %s29
      %p57 = scmp.eq.s32.totalorder %s56, 0
      %s59 = sadd.s32 %s58, 1
      %s60 = scalar_select %p57, %s58, %s59
      %p63 = pneg %p57
      %p64 = scmp.eq.s32.totalorder %s22, 1
      %p65 = por %p63, %p64
      %p66 = scmp.ne.s32.totalorder %s58, %s61
      %p67 = scmp.eq.s32.totalorder %s22, 0
      %p68 = por %p66, %p67
      %p69 = scmp.ne.s32.totalorder %s58, %s61
      %p70 = scmp.eq.s32.totalorder %s27, 1
      %p71 = por %p69, %p70
      %p72 = scmp.ne.s32.totalorder %s61, %s62
      %p73 = scmp.eq.s32.totalorder %s27, 0
      %p74 = por %p72, %p73
      %p75 = scmp.ne.s32.totalorder %s61, %s62
      %p76 = scmp.eq.s32.totalorder %s28, 1
      %p77 = por %p75, %p76
      %p79 = scmp.ne.s32.totalorder %s62, %s78
      %p80 = scmp.eq.s32.totalorder %s28, 0
      %p81 = por %p79, %p80
      %s83 = sadd.s32 %s82, 1
      %p86 = scmp.eq.s32.totalorder %s22, 1
      %p87 = scmp.ne.s32.totalorder %s82, %s84
      %p88 = scmp.eq.s32.totalorder %s22, 0
      %p89 = por %p87, %p88
      %p90 = scmp.ne.s32.totalorder %s82, %s84
      %p91 = scmp.eq.s32.totalorder %s27, 1
      %p92 = por %p90, %p91
      %p93 = scmp.ne.s32.totalorder %s84, %s85
      %p94 = scmp.eq.s32.totalorder %s27, 0
      %p95 = por %p93, %p94
      %p96 = scmp.ne.s32.totalorder %s84, %s85
      %p97 = scmp.eq.s32.totalorder %s28, 1
      %p98 = por %p96, %p97
      %p100 = scmp.ne.s32.totalorder %s85, %s99
      %p101 = scmp.eq.s32.totalorder %s28, 0
      %p102 = por %p100, %p101
      %s104 = sadd.s32 %s103, 1
      %p107 = scmp.eq.s32.totalorder %s22, 1
      %p108 = scmp.ne.s32.totalorder %s103, %s105
      %p109 = scmp.eq.s32.totalorder %s22, 0
      %p110 = por %p108, %p109
      %p111 = scmp.ne.s32.totalorder %s103, %s105
      %p112 = scmp.eq.s32.totalorder %s27, 1
      %p113 = por %p111, %p112
      %p114 = scmp.ne.s32.totalorder %s105, %s106
      %p115 = scmp.eq.s32.totalorder %s27, 0
      %p116 = por %p114, %p115
      %p117 = scmp.ne.s32.totalorder %s105, %s106
      %p118 = scmp.eq.s32.totalorder %s28, 1
      %p119 = por %p117, %p118
      %p121 = scmp.ne.s32.totalorder %s106, %s120
      %p122 = scmp.eq.s32.totalorder %s28, 0
      %p123 = por %p121, %p122
      %s125 = sadd.s32 %s124, 1
      %p128 = scmp.eq.s32.totalorder %s22, 1
      %p129 = scmp.ne.s32.totalorder %s124, %s126
      %p130 = scmp.eq.s32.totalorder %s22, 0
      %p131 = por %p129, %p130
      %p132 = scmp.ne.s32.totalorder %s124, %s126
      %p133 = scmp.eq.s32.totalorder %s27, 1
      %p134 = por %p132, %p133
      %p135 = scmp.ne.s32.totalorder %s126, %s127
      %p136 = scmp.eq.s32.totalorder %s27, 0
      %p137 = por %p135, %p136
      %p138 = scmp.ne.s32.totalorder %s126, %s127
      %p139 = scmp.eq.s32.totalorder %s28, 1
      %p140 = por %p138, %p139
      %p142 = scmp.ne.s32.totalorder %s127, %s141
      %p143 = scmp.eq.s32.totalorder %s28, 0
      %p144 = por %p142, %p143
      %s146 = sadd.s32 %s145, 1
      %p149 = scmp.eq.s32.totalorder %s22, 1
      %p150 = scmp.ne.s32.totalorder %s145, %s147
      %p151 = scmp.eq.s32.totalorder %s22, 0
      %p152 = por %p150, %p151
      %p153 = scmp.ne.s32.totalorder %s145, %s147
      %p154 = scmp.eq.s32.totalorder %s27, 1
      %p155 = por %p153, %p154
      %p156 = scmp.ne.s32.totalorder %s147, %s148
      %p157 = scmp.eq.s32.totalorder %s27, 0
      %p158 = por %p156, %p157
      %p159 = scmp.ne.s32.totalorder %s147, %s148
      %p160 = scmp.eq.s32.totalorder %s28, 1
      %p161 = por %p159, %p160
      %p163 = scmp.ne.s32.totalorder %s148, %s162
      %p164 = scmp.eq.s32.totalorder %s28, 0
      %p165 = por %p163, %p164
      %s166 = ssub.s32 %s22, %s29
      %p167 = scmp.eq.s32.totalorder %s166, 0
      %s169 = sadd.s32 %s168, 1
      %s170 = scalar_select %p167, %s168, %s169
      %p173 = pneg %p167
      %p174 = scmp.eq.s32.totalorder %s22, 1
      %p175 = por %p173, %p174
      %p176 = scmp.ne.s32.totalorder %s168, %s171
      %p177 = scmp.eq.s32.totalorder %s22, 0
      %p178 = por %p176, %p177
      %p179 = scmp.ne.s32.totalorder %s168, %s171
      %p180 = scmp.eq.s32.totalorder %s27, 1
      %p181 = por %p179, %p180
      %p182 = scmp.ne.s32.totalorder %s171, %s172
      %p183 = scmp.eq.s32.totalorder %s27, 0
      %p184 = por %p182, %p183
      %p185 = scmp.ne.s32.totalorder %s171, %s172
      %p186 = scmp.eq.s32.totalorder %s28, 1
      %p187 = por %p185, %p186
      %p189 = scmp.ne.s32.totalorder %s172, %s188
      %p190 = scmp.eq.s32.totalorder %s28, 0
      %p191 = por %p189, %p190
      %p192 = scmp.le.s32.totalorder 1, %s22
      %p193 = scmp.lt.s32.totalorder %s22, 3
      %p194 = pnand %p192, %p193
      %p195 = pneg %p194
      // Predicated region
      $region9: #{tpu_custom_call.1} parent=5 // pred_check
        _
      $region10: #{tpu_custom_call.1} parent=5 // pred_check_branch
        %197 = sbr.rel (%p194) target = $region12
      $region11: #{tpu_custom_call.1} parent=5 // pred_region
        %s198 = ssub.s32 %s22, 1
        // Predicated region
        $region13: #{tpu_custom_call.1} parent=11 // pred_check
          %p199 = pneg %p95
        $region14: #{tpu_custom_call.1} parent=11 // pred_check_branch
          %201 = sbr.rel (%p199) target = $region16
        $region15: #{tpu_custom_call.1} parent=11 // pred_region
          %203 = vsyncadd [#allocation6], 0
          %s204 = sshll.u32 %s2, 4
          %s205 = int_to_ptr.hbm [resolvable:$true] %s204
          %s206 = sshll.u32 [#allocation7], 4
          %s207 = int_to_ptr.vmem [resolvable:$true] %s206
          %212 = dma.hbm_to_vmem [thread:$0]  %s205, 512, %s207, [#allocation6], 128, 128, 8
        $region16: #{tpu_custom_call.1} parent=11 // pred_fallthru
          _
        // Predicated region
        $region17: #{tpu_custom_call.1} parent=11 // pred_check
          %p213 = pneg %p116
        $region18: #{tpu_custom_call.1} parent=11 // pred_check_branch
          %215 = sbr.rel (%p213) target = $region20
        $region19: #{tpu_custom_call.1} parent=11 // pred_region
          _
        $region20: #{tpu_custom_call.1} parent=11 // pred_fallthru
          _
        // Predicated region
        $region21: #{tpu_custom_call.1} parent=11 // pred_check
          %p216 = pneg %p137
        $region22: #{tpu_custom_call.1} parent=11 // pred_check_branch
          %218 = sbr.rel (%p216) target = $region24
        $region23: #{tpu_custom_call.1} parent=11 // pred_region
          %220 = vsyncadd [#allocation9], 0
          %s221 = sshll.u32 %s4, 4
          %s222 = int_to_ptr.hbm [resolvable:$true] %s221
          %s223 = sshll.u32 [#allocation8], 4
          %s224 = int_to_ptr.vmem [resolvable:$true] %s223
          %229 = dma.hbm_to_vmem [thread:$0]  %s222, 512, %s224, [#allocation9], 128, 128, 8
        $region24: #{tpu_custom_call.1} parent=11 // pred_fallthru
          _
        // Predicated region
        $region25: #{tpu_custom_call.1} parent=11 // pred_check
          %p230 = pneg %p158
        $region26: #{tpu_custom_call.1} parent=11 // pred_check_branch
          %232 = sbr.rel (%p230) target = $region28
        $region27: #{tpu_custom_call.1} parent=11 // pred_region
          _
        $region28: #{tpu_custom_call.1} parent=11 // pred_fallthru
          _
      $region12: #{tpu_custom_call.1} parent=5 // pred_fallthru
        _
      %p233 = scmp.lt.s32.totalorder %s22, 2
      // Predicated region
      $region29: #{tpu_custom_call.1} parent=5 // pred_check
        %p234 = pneg %p233
      $region30: #{tpu_custom_call.1} parent=5 // pred_check_branch
        %236 = sbr.rel (%p234) target = $region32
      $region31: #{tpu_custom_call.1} parent=5 // pred_region
        // Predicated region
        $region33: #{tpu_custom_call.1} parent=31 // pred_check
          %p237 = pneg %p42
        $region34: #{tpu_custom_call.1} parent=31 // pred_check_branch
          %239 = sbr.rel (%p237) target = $region36
        $region35: #{tpu_custom_call.1} parent=31 // pred_region
          %s240 = sand.u32 %s32, 1
          %s241 = scalar_lea.sflag [#allocation3], %s240
          %s242 = sand.u32 %s32, 1
          %s243 = smul.addr %s242, 16
          %s244 = scalar_lea.vmem [#allocation2], %s243
          %s245 = smul.u32 2, %s22
          %247 = vsyncadd %s241, 0
          %s248 = smul.addr %s245, 8
          %s249 = scalar_lea.hbm %s0, %s248
          %s250 = sshll.u32 %s249, 4
          %s251 = int_to_ptr.hbm [resolvable:$true] %s250
          %s252 = sshll.u32 %s244, 4
          %s253 = int_to_ptr.vmem [resolvable:$true] %s252
          %258 = dma.hbm_to_vmem [thread:$0]  %s251, 256, %s253, %s241, 128, 128, 8
        $region36: #{tpu_custom_call.1} parent=31 // pred_fallthru
          _
        // Predicated region
        $region37: #{tpu_custom_call.1} parent=31 // pred_check
          %p259 = pneg %p68
        $region38: #{tpu_custom_call.1} parent=31 // pred_check_branch
          %261 = sbr.rel (%p259) target = $region40
        $region39: #{tpu_custom_call.1} parent=31 // pred_region
          %s262 = sand.u32 %s22, 1
          %s263 = scalar_lea.sflag [#allocation6], %s262
          %s264 = sand.u32 %s58, 1
          %s265 = smul.addr %s264, 4
          %s266 = scalar_lea.vmem [#allocation5], %s265
          %s267 = smul.u32 2, %s22
          %269 = vsyncadd %s263, 0
          %s270 = smul.addr %s267, 2
          %s271 = scalar_lea.hbm %s1, %s270
          %s272 = sshll.u32 %s271, 4
          %s273 = int_to_ptr.hbm [resolvable:$true] %s272
          %s274 = sshll.u32 %s266, 4
          %s275 = int_to_ptr.vmem [resolvable:$true] %s274
          %280 = dma.hbm_to_vmem [thread:$0]  %s273, 64, %s275, %s263, 32, 32, 2
        $region40: #{tpu_custom_call.1} parent=31 // pred_fallthru
          _
      $region32: #{tpu_custom_call.1} parent=5 // pred_fallthru
        _
      %p281 = scmp.le.s32.totalorder 1, %s22
      %p282 = scmp.lt.s32.totalorder %s22, 3
      %p283 = pnand %p281, %p282
      %p284 = pneg %p283
      // Predicated region
      $region41: #{tpu_custom_call.1} parent=5 // pred_check
        _
      $region42: #{tpu_custom_call.1} parent=5 // pred_check_branch
        %286 = sbr.rel (%p283) target = $region44
      $region43: #{tpu_custom_call.1} parent=5 // pred_region
        %s287 = ssub.s32 %s22, 1
        %s288 = sand.u32 %s35, 1
        %s289 = scalar_lea.sflag [#allocation3], %s288
        %s290 = sand.u32 %s35, 1
        %s291 = smul.addr %s290, 16
        %s292 = scalar_lea.vmem [#allocation2], %s291
        // Predicated region
        $region45: #{tpu_custom_call.1} parent=43 // pred_check
          %p293 = pneg %p48
        $region46: #{tpu_custom_call.1} parent=43 // pred_check_branch
          %295 = sbr.rel (%p293) target = $region48
        $region47: #{tpu_custom_call.1} parent=43 // pred_region
          %297 = dma.done %s289, 256
        $region48: #{tpu_custom_call.1} parent=43 // pred_fallthru
          _
        %s298 = sand.u32 %s27, 1
        %s299 = scalar_lea.sflag [#allocation6], %s298
        %s300 = sand.u32 %s61, 1
        %s301 = smul.addr %s300, 4
        %s302 = scalar_lea.vmem [#allocation5], %s301
        // Predicated region
        $region49: #{tpu_custom_call.1} parent=43 // pred_check
          %p303 = pneg %p74
        $region50: #{tpu_custom_call.1} parent=43 // pred_check_branch
          %305 = sbr.rel (%p303) target = $region52
        $region51: #{tpu_custom_call.1} parent=43 // pred_region
          %307 = dma.done %s299, 64
        $region52: #{tpu_custom_call.1} parent=43 // pred_fallthru
          _
        // Predicated region
        $region53: #{tpu_custom_call.1} parent=43 // pred_check
          %p308 = pneg %p95
        $region54: #{tpu_custom_call.1} parent=43 // pred_check_branch
          %310 = sbr.rel (%p308) target = $region56
        $region55: #{tpu_custom_call.1} parent=43 // pred_region
          %312 = dma.done [#allocation6], 512
        $region56: #{tpu_custom_call.1} parent=43 // pred_fallthru
          _
        // Predicated region
        $region57: #{tpu_custom_call.1} parent=43 // pred_check
          %p313 = pneg %p137
        $region58: #{tpu_custom_call.1} parent=43 // pred_check_branch
          %315 = sbr.rel (%p313) target = $region60
        $region59: #{tpu_custom_call.1} parent=43 // pred_region
          %317 = dma.done [#allocation9], 512
        $region60: #{tpu_custom_call.1} parent=43 // pred_fallthru
          _
        %s318 = sand.u32 %s35, 1
        %s319 = scalar_lea.sflag [#allocation3], %s318
        %s320 = sand.u32 %s35, 1
        %s321 = smul.addr %s320, 16
        %s322 = scalar_lea.vmem [#allocation2], %s321
        %p323 = pneg %p48
        %p324 = pneg %p45
        %s325 = sand.u32 %s27, 1
        %s326 = scalar_lea.sflag [#allocation6], %s325
        %s327 = sand.u32 %s61, 1
        %s328 = smul.addr %s327, 4
        %s329 = scalar_lea.vmem [#allocation5], %s328
        %p330 = pneg %p74
        %p331 = pneg %p71
        %p332 = pneg %p95
        %p333 = pneg %p92
        %p334 = pneg %p116
        %p335 = pneg %p113
        %p336 = pneg %p137
        %p337 = pneg %p134
        %p338 = pneg %p158
        %p339 = pneg %p155
        %p340 = pneg %p184
        %p341 = pneg %p181
        %s342 = sand.u32 %s171, 1
        %s343 = scalar_lea.sflag [#allocation4], %s342
        %s344 = sand.u32 %s171, 1
        %s345 = smul.addr %s344, 16
        %s346 = scalar_lea.vmem [#allocation10], %s345
        %s347 = smul.u32 2, %s27
        %s348 = smul.u32 2, %s27
        %s349 = smul.u32 2, %s27
        %v350 = vld [vmem:[%s292] sm:$0xff]
        %v351 = vld [vmem:[%s292 + $0x8] sm:$0xff]
        %v352 = vld [vmem:[#allocation7] sm:$0xff]
        %v353 = vld [vmem:[#allocation7 + $0x8] sm:$0xff]
        %v354 = vld [vmem:[#allocation7 + $0x10] sm:$0xff]
        %v355 = vld [vmem:[#allocation7 + $0x18] sm:$0xff]
        %v356 = vld [vmem:[%s3] sm:$0x1]
        %v358 = vperm.slane %v356, 0
        %vm360 = vcmask 261120
        %v362 = vsel %vm360, %v350, 0
        %v365 = vsel %vm360, %v351, 0
        %367 = vmatpush.msra.mxu0 0.0
        %368 = vmatpush.msra.mxu0 0.0
        %369 = vmatpush.msra.mxu0 0.0
        %370 = vmatpush.msra.mxu0 0.0
        %371 = vmatpush.msra.mxu0 0.0
        %372 = vmatpush.msra.mxu0 0.0
        %373 = vmatpush.msra.mxu0 0.0
        %374 = vmatpush.msra.mxu0 0.0
        %375 = vmatpush.msra.mxu0 0.0
        %376 = vmatpush.msra.mxu0 0.0
        %377 = vmatpush.msra.mxu0 0.0
        %378 = vmatpush.msra.mxu0 0.0
        %379 = vmatpush.msra.mxu0 %v355
        %380 = vmatpush.msra.mxu0 %v354
        %381 = vmatpush.msra.mxu0 %v353
        %382 = vmatpush.msra.mxu0 %v352
        %383 = vmatmul.f32.gmra.mxu0 %v362
        %v384 = vpop.f32.mrf.mxu0
        %v385 = vadd.f32 %v358, %v384
        %386 = vmatmul.f32.gmra.mxu0 %v365
        %v387 = vpop.f32.mrf.mxu0
        %v388 = vadd.f32 %v358, %v387
        %389 = vdwg.mxu0
        %391 = vrot.lane.b32.xlu0 %v385, 96
        %v392 = vpop.permute.xlu0 %391
        %v393 = vsel %vm360, %v385, 0
        %v395 = vsel %vm360, %v392, 0
        %397 = vmatpush.xpose.msra.mxu0 0.0
        %398 = vmatpush.xpose.msra.mxu0 0.0
        %399 = vmatpush.xpose.msra.mxu0 0.0
        %400 = vmatpush.xpose.msra.mxu0 0.0
        %401 = vmatpush.xpose.msra.mxu0 0.0
        %402 = vmatpush.xpose.msra.mxu0 0.0
        %403 = vmatpush.xpose.msra.mxu0 0.0
        %404 = vmatpush.xpose.msra.mxu0 0.0
        %405 = vmatpush.xpose.msra.mxu0 0.0
        %406 = vmatpush.xpose.msra.mxu0 0.0
        %407 = vmatpush.xpose.msra.mxu0 0.0
        %408 = vmatpush.xpose.msra.mxu0 0.0
        %409 = vmatpush.xpose.msra.mxu0 0.0
        %410 = vmatpush.xpose.msra.mxu0 0.0
        %411 = vmatpush.xpose.msra.mxu0 0.0
        %412 = vmatpush.xpose.msra.mxu0 %v395
        %413 = vmatmul.f32.gmra.mxu0 %v393
        %v414 = vpop.f32.mrf.mxu0
        %v415 = vadd.f32 0.0, %v414
        %416 = vdwg.mxu0
        %418 = vrot.lane.b32.xlu0 %v388, 96
        %v419 = vpop.permute.xlu0 %418
        %v420 = vsel %vm360, %v388, 0
        %v422 = vsel %vm360, %v419, 0
        %424 = vmatpush.xpose.msra.mxu0 0.0
        %425 = vmatpush.xpose.msra.mxu0 0.0
        %426 = vmatpush.xpose.msra.mxu0 0.0
        %427 = vmatpush.xpose.msra.mxu0 0.0
        %428 = vmatpush.xpose.msra.mxu0 0.0
        %429 = vmatpush.xpose.msra.mxu0 0.0
        %430 = vmatpush.xpose.msra.mxu0 0.0
        %431 = vmatpush.xpose.msra.mxu0 0.0
        %432 = vmatpush.xpose.msra.mxu0 0.0
        %433 = vmatpush.xpose.msra.mxu0 0.0
        %434 = vmatpush.xpose.msra.mxu0 0.0
        %435 = vmatpush.xpose.msra.mxu0 0.0
        %436 = vmatpush.xpose.msra.mxu0 0.0
        %437 = vmatpush.xpose.msra.mxu0 0.0
        %438 = vmatpush.xpose.msra.mxu0 0.0
        %439 = vmatpush.xpose.msra.mxu0 %v422
        %440 = vmatmul.f32.gmra.mxu0 %v420
        %v441 = vpop.f32.mrf.mxu0
        %v442 = vadd.f32 0.0, %v441
        %443 = vdwg.mxu0
        %v444 = vld [vmem:[%s302] sm:$0x3]
        %v445 = vld [vmem:[%s302 + $0x2] sm:$0x3]
        %v446 = vunpack.c.0.s8 %v444
        %v447 = vunpack.c.0.s8 %v445
        %v448 = vcvt.s32.f32 %v446
        %v449 = vcvt.s32.f32 %v447
        %vm450 = vcmp.gt.f32.partialorder %v448, 0.0
        %vm451 = vcmp.gt.f32.partialorder %v449, 0.0
        %v452 = vsel %vm450, %v415, -1e+30
        %v453 = vsel %vm451, %v442, -1e+30
        %vm454 = vcmask 64512
        %v455 = vsel %vm454, %v452, -inf
        %456 = vmax.xlane.f32.xlu0 %v455
        %v457 = vpop.xlane.xlu0 %456
        %v458 = vsel %vm454, %v453, -inf
        %459 = vmax.xlane.f32.xlu0 %v458
        %v460 = vpop.xlane.xlu0 %459
        %v461 = vsub.f32 %v452, %v457
        %v462 = vsub.f32 %v453, %v460
        %v463 = vmul.f32 %v461, 1.442695
        %v464 = vpow.pop %v463
        %v465 = vmul.f32 %v462, 1.442695
        %v466 = vpow.pop %v465
        %v467 = vsel %vm454, %v464, 0.0
        %468 = vadd.xlane.f32.xlu0 %v467
        %v469 = vpop.xlane.xlu0 %468
        %v470 = vsel %vm454, %v466, 0.0
        %471 = vadd.xlane.f32.xlu0 %v470
        %v472 = vpop.xlane.xlu0 %471
        %v473 = vrcp.pop %v469
        %v474 = vmul.f32 %v469, %v473
        %v475 = vsub.f32 1.0, %v474
        %v476 = vmul.f32 %v473, %v475
        %v477 = vadd.f32 %v473, %v476
        %vm478 = vweird.f32 %v469
        %vm479 = vweird.f32 %v473
        %vm480 = vmor %vm478, %vm479
        %v481 = vsel %vm480, %v473, %v477
        %v482 = vand.u32 2147483647, %v469
        %vm483 = vcmp.eq.f32.partialorder %v482, 8.507059e+37
        %v484 = vand.u32 %v469, 2147483648
        %v485 = vor.u32 1.1754944e-38, %v484
        %v486 = vsel %vm483, %v485, %v481
        %v487 = vrcp.pop %v472
        %v488 = vmul.f32 %v472, %v487
        %v489 = vsub.f32 1.0, %v488
        %v490 = vmul.f32 %v487, %v489
        %v491 = vadd.f32 %v487, %v490
        %vm492 = vweird.f32 %v472
        %vm493 = vweird.f32 %v487
        %vm494 = vmor %vm492, %vm493
        %v495 = vsel %vm494, %v487, %v491
        %v496 = vand.u32 2147483647, %v472
        %vm497 = vcmp.eq.f32.partialorder %v496, 8.507059e+37
        %v498 = vand.u32 %v472, 2147483648
        %v499 = vor.u32 1.1754944e-38, %v498
        %v500 = vsel %vm497, %v499, %v495
        %v501 = vmul.f32 %v464, %v486
        %v502 = vmul.f32 %v466, %v500
        %503 = vrot.lane.b32.xlu0 %v385, 64
        %v504 = vpop.permute.xlu0 %503
        %v507 = vsel %vm454, %v501, 0
        %509 = vmatpush.msra.mxu0 0.0
        %510 = vmatpush.msra.mxu0 0.0
        %511 = vmatpush.msra.mxu0 0.0
        %512 = vmatpush.msra.mxu0 0.0
        %513 = vmatpush.msra.mxu0 0.0
        %514 = vmatpush.msra.mxu0 0.0
        %515 = vmatpush.msra.mxu0 0.0
        %516 = vmatpush.msra.mxu0 0.0
        %517 = vmatpush.msra.mxu0 0.0
        %518 = vmatpush.msra.mxu0 0.0
        %519 = vmatpush.msra.mxu0 0.0
        %520 = vmatpush.msra.mxu0 0.0
        %521 = vmatpush.msra.mxu0 0.0
        %522 = vmatpush.msra.mxu0 0.0
        %523 = vmatpush.msra.mxu0 0.0
        %524 = vmatpush.msra.mxu0 %v504
        %525 = vmatmul.f32.gmra.mxu0 %v507
        %v526 = vpop.f32.mrf.mxu0
        %v527 = vadd.f32 0.0, %v526
        %528 = vdwg.mxu0
        %529 = vrot.lane.b32.xlu0 %v388, 64
        %v530 = vpop.permute.xlu0 %529
        %v533 = vsel %vm454, %v502, 0
        %535 = vmatpush.msra.mxu0 0.0
        %536 = vmatpush.msra.mxu0 0.0
        %537 = vmatpush.msra.mxu0 0.0
        %538 = vmatpush.msra.mxu0 0.0
        %539 = vmatpush.msra.mxu0 0.0
        %540 = vmatpush.msra.mxu0 0.0
        %541 = vmatpush.msra.mxu0 0.0
        %542 = vmatpush.msra.mxu0 0.0
        %543 = vmatpush.msra.mxu0 0.0
        %544 = vmatpush.msra.mxu0 0.0
        %545 = vmatpush.msra.mxu0 0.0
        %546 = vmatpush.msra.mxu0 0.0
        %547 = vmatpush.msra.mxu0 0.0
        %548 = vmatpush.msra.mxu0 0.0
        %549 = vmatpush.msra.mxu0 0.0
        %550 = vmatpush.msra.mxu0 %v530
        %551 = vmatmul.f32.gmra.mxu0 %v533
        %v552 = vpop.f32.mrf.mxu0
        %v553 = vadd.f32 0.0, %v552
        %554 = vdwg.mxu0
        %v555 = vld [vmem:[#allocation8] sm:$0xff]
        %v556 = vld [vmem:[#allocation8 + $0x8] sm:$0xff]
        %v557 = vld [vmem:[#allocation8 + $0x10] sm:$0xff]
        %v558 = vld [vmem:[#allocation8 + $0x18] sm:$0xff]
        %v559 = vld [vmem:[%s5] sm:$0x1]
        %v561 = vperm.slane %v559, 0
        %v564 = vsel %vm360, %v527, 0
        %v567 = vsel %vm360, %v553, 0
        %569 = vmatpush.msra.mxu0 0.0
        %570 = vmatpush.msra.mxu0 0.0
        %571 = vmatpush.msra.mxu0 0.0
        %572 = vmatpush.msra.mxu0 0.0
        %573 = vmatpush.msra.mxu0 0.0
        %574 = vmatpush.msra.mxu0 0.0
        %575 = vmatpush.msra.mxu0 0.0
        %576 = vmatpush.msra.mxu0 0.0
        %577 = vmatpush.msra.mxu0 0.0
        %578 = vmatpush.msra.mxu0 0.0
        %579 = vmatpush.msra.mxu0 0.0
        %580 = vmatpush.msra.mxu0 0.0
        %581 = vmatpush.msra.mxu0 %v558
        %582 = vmatpush.msra.mxu0 %v557
        %583 = vmatpush.msra.mxu0 %v556
        %584 = vmatpush.msra.mxu0 %v555
        %585 = vmatmul.f32.gmra.mxu0 %v564
        %v586 = vpop.f32.mrf.mxu0
        %v587 = vadd.f32 %v561, %v586
        %588 = vmatmul.f32.gmra.mxu0 %v567
        %v589 = vpop.f32.mrf.mxu0
        %v590 = vadd.f32 %v561, %v589
        %591 = vdwg.mxu0
        %592 = vst.msk [vmem:[%s346] sm:$0xff] %vm360, %v587
        %593 = vst.msk [vmem:[%s346 + $0x8] sm:$0xff] %vm360, %v590
        %s594 = sand.u32 %s171, 1
        %s595 = scalar_lea.sflag [#allocation4], %s594
        %s596 = sand.u32 %s171, 1
        %s597 = smul.addr %s596, 16
        %s598 = scalar_lea.vmem [#allocation10], %s597
        // Predicated region
        $region61: #{tpu_custom_call.1} parent=43 // pred_check
          %p599 = pneg %p181
        $region62: #{tpu_custom_call.1} parent=43 // pred_check_branch
          %601 = sbr.rel (%p599) target = $region64
        $region63: #{tpu_custom_call.1} parent=43 // pred_region
          %s602 = smul.u32 2, %s27
          %604 = vsyncadd %s595, 0
          %s605 = smul.addr %s602, 8
          %s606 = scalar_lea.hbm %s6, %s605
          %s607 = sshll.u32 %s598, 4
          %s608 = int_to_ptr.vmem [resolvable:$true] %s607
          %s609 = sshll.u32 %s606, 4
          %s610 = int_to_ptr.hbm [resolvable:$true] %s609
          %615 = dma.vmem_to_hbm [thread:$0]  %s608, 256, %s610, %s595, 128, 128, 8
        $region64: #{tpu_custom_call.1} parent=43 // pred_fallthru
          _
      $region44: #{tpu_custom_call.1} parent=5 // pred_fallthru
        _
      %p616 = scmp.le.s32.totalorder 2, %s22
      // Predicated region
      $region65: #{tpu_custom_call.1} parent=5 // pred_check
        %p617 = pneg %p616
      $region66: #{tpu_custom_call.1} parent=5 // pred_check_branch
        %619 = sbr.rel (%p617) target = $region68
      $region67: #{tpu_custom_call.1} parent=5 // pred_region
        %s620 = ssub.s32 %s22, 2
        // Predicated region
        $region69: #{tpu_custom_call.1} parent=67 // pred_check
          %p621 = pneg %p187
        $region70: #{tpu_custom_call.1} parent=67 // pred_check_branch
          %623 = sbr.rel (%p621) target = $region72
        $region71: #{tpu_custom_call.1} parent=67 // pred_region
          %s624 = sand.u32 %s172, 1
          %s625 = scalar_lea.sflag [#allocation4], %s624
          %s626 = sand.u32 %s172, 1
          %s627 = smul.addr %s626, 16
          %s628 = scalar_lea.vmem [#allocation10], %s627
          %630 = dma.done %s625, 256
        $region72: #{tpu_custom_call.1} parent=67 // pred_fallthru
          _
      $region68: #{tpu_custom_call.1} parent=5 // pred_fallthru
        _
    $region6: #{tpu_custom_call.1} parent=1 // loop_footer
      %s26 = sadd.s32 1, %s22
    $region7: #{tpu_custom_call.1} parent=1 // loop_footer_branch
      %21 = sbr.rel target = $region3
    $region8: #{tpu_custom_call.1} parent=1 // loop_exit
      _
    %631 = vsyncpa [#allocation3], 1
    %s632 = scalar_lea.sflag [#allocation3], 1
    %633 = vsyncpa %s632, 1
    %634 = vsyncpa [#allocation6], 1
    %s635 = scalar_lea.sflag [#allocation6], 1
    %636 = vsyncpa %s635, 1
    %637 = vsyncpa [#allocation9], 1
    %638 = vsyncpa [#allocation4], 1
    %s639 = scalar_lea.sflag [#allocation4], 1
    %640 = vsyncpa %s639, 1

</llo_original>
